<compile_context>
chip_gen: v7x
topology: tpu7x:2x2x1
jax: 0.10.0
libtpu: 0.0.40
codegen_flags: <defaults>
</compile_context>

<pallas_src>
import functools

import jax
import jax.numpy as jnp
from jax.experimental import pallas as pl
from jax.experimental.pallas import tpu as pltpu


# ----------------------------------------------------------------------------
# Fused kernel: one grid step per batch element.
#   qkv = x @ W_attn + b_attn                (bf16 MXU, f32 acc)
#   per head h: scores -> tril mask(-10000) -> f32 softmax -> @ V_h
#               acc += a_h @ W_proj[rows of head h]          (f32 acc)
#   out = acc + b_proj                       (single lane-dense store)
# ----------------------------------------------------------------------------
def _fused_masked_attention_kernel(
    x_ref, wqkv_ref, bqkv_ref, wproj_ref, bproj_ref, o_ref, *, n_head, scale
):
    s = x_ref.shape[1]
    nx = x_ref.shape[2]
    hd = nx // n_head

    x = x_ref[0]  # [S, nx] bf16

    # --- c_attn: qkv = x @ W_attn + b_attn, kept in bf16 for the MXU feeds ---
    qkv = jnp.dot(x, wqkv_ref[...], preferred_element_type=jnp.float32)
    qkv = (qkv + bqkv_ref[...]).astype(jnp.bfloat16)  # [S, 3*nx]

    # Causal (tril) mask built once from 2-D iotas; reused for every head.
    row = jax.lax.broadcasted_iota(jnp.int32, (s, s), 0)
    col = jax.lax.broadcasted_iota(jnp.int32, (s, s), 1)
    causal = col <= row
    masked_bias = jnp.float32(-10000.0)
    inv_sqrt_hd = jnp.float32(1.0 / float(hd) ** 0.5)

    wproj = wproj_ref[...]  # [nx, nx] bf16

    # f32 accumulator for the (already projected) output — no head concat.
    acc = jnp.zeros((s, nx), dtype=jnp.float32)

    for h in range(n_head):  # static unroll; heads live on the feature axis
        lo = h * hd
        q_h = qkv[:, lo:lo + hd]
        k_h = qkv[:, nx + lo:nx + lo + hd]
        v_h = qkv[:, 2 * nx + lo:2 * nx + lo + hd]

        # scores = q_h @ k_h^T, contracted natively (no materialized transpose)
        w = jax.lax.dot_general(
            q_h, k_h,
            dimension_numbers=(((1,), (1,)), ((), ())),
            preferred_element_type=jnp.float32,
        )  # [S, S] f32
        if scale:
            w = w * inv_sqrt_hd
        w = jnp.where(causal, w, masked_bias)

        # numerically stable f32 softmax (matches nn.Softmax(dim=-1))
        w = w - jnp.max(w, axis=-1, keepdims=True)
        e = jnp.exp(w)
        p = e * pl.reciprocal(jnp.sum(e, axis=-1, keepdims=True), approx=True)

        a_h = jnp.dot(
            p.astype(jnp.bfloat16), v_h, preferred_element_type=jnp.float32
        )  # [S, hd] f32

        # merge_heads + c_proj folded together:
        #   concat_h(a_h) @ W_proj == sum_h a_h @ W_proj[h*hd:(h+1)*hd, :]
        acc = acc + jnp.dot(
            a_h.astype(jnp.bfloat16),
            wproj[lo:lo + hd, :],
            preferred_element_type=jnp.float32,
        )

    # c_proj bias + single lane-dense [S, nx] store, f32 out.
    o_ref[0] = (acc + bproj_ref[...]).astype(o_ref.dtype)


def masked_attention(x, w_attn, b_attn, w_proj, b_proj, *, n_head, scale=False):
    """Forward pass of MaskedAttention (layer_past=None, use_cache=False,
    attention_mask=None, head_mask=None, dropout = identity / eval mode).

    x: [B, S, nx] float32
    w_attn: [nx, 3*nx], b_attn: [3*nx]
    w_proj: [nx, nx],  b_proj: [nx]
    returns: [B, S, nx] float32
    """
    B, S, nx = x.shape
    assert nx % n_head == 0

    # Pre-cast MXU operands to bf16 ONCE (amortized across the whole call);
    # biases stay f32 and are added to f32 accumulators.
    x_bf = x.astype(jnp.bfloat16)
    w_attn_bf = w_attn.astype(jnp.bfloat16)
    w_proj_bf = w_proj.astype(jnp.bfloat16)
    b_attn_f = b_attn.astype(jnp.float32).reshape(1, 3 * nx)
    b_proj_f = b_proj.astype(jnp.float32).reshape(1, nx)

    out = pl.pallas_call(
        functools.partial(_fused_masked_attention_kernel, n_head=n_head, scale=scale),
        out_shape=jax.ShapeDtypeStruct((B, S, nx), jnp.float32),
        grid=(B,),
        in_specs=[
            pl.BlockSpec((1, S, nx), lambda b: (b, 0, 0)),        # x (per batch)
            pl.BlockSpec((nx, 3 * nx), lambda b: (0, 0)),          # W_attn (resident)
            pl.BlockSpec((1, 3 * nx), lambda b: (0, 0)),           # b_attn
            pl.BlockSpec((nx, nx), lambda b: (0, 0)),              # W_proj (resident)
            pl.BlockSpec((1, nx), lambda b: (0, 0)),               # b_proj
        ],
        out_specs=pl.BlockSpec((1, S, nx), lambda b: (b, 0, 0)),
        compiler_params=pltpu.CompilerParams(
            dimension_semantics=("parallel",),
        ),
    )(x_bf, w_attn_bf, b_attn_f, w_proj_bf, b_proj_f)

    # TODO(synk): attn_dropout / resid_dropout omitted (identity in eval mode).
    # TODO(synk): for production S (>=512) split into tiled c_attn/c_proj matmuls
    #             plus a flash-style attention with a q-tile grid axis and
    #             vmem_limit_bytes raised (v5e default scoped VMEM is 16 MiB).
    return out


if __name__ == "__main__":
    # config: n_head = 4; module args: nx = 32, n_ctx = 8 (== seq), scale = False
    B, S, NX, N_HEAD = 2, 8, 32, 4

    key = jax.random.PRNGKey(0)
    kx, kw1, kw2 = jax.random.split(key, 3)

    x = jax.random.normal(kx, (B, S, NX), dtype=jnp.float32)

    # Conv1D params: weight ~ N(0, 0.02), bias = 0
    w_attn = 0.02 * jax.random.normal(kw1, (NX, 3 * NX), dtype=jnp.float32)
    b_attn = jnp.zeros((3 * NX,), dtype=jnp.float32)
    w_proj = 0.02 * jax.random.normal(kw2, (NX, NX), dtype=jnp.float32)
    b_proj = jnp.zeros((NX,), dtype=jnp.float32)

    out = masked_attention(
        x, w_attn, b_attn, w_proj, b_proj, n_head=N_HEAD, scale=False
    )
    out = jax.block_until_ready(out)
    assert out.shape == (B, S, NX)
    assert out.dtype == jnp.float32

    # Pure-JAX f32 reference (same math as the PyTorch module, eval mode).
    def ref_forward(x, w_attn, b_attn, w_proj, b_proj):
        qkv = x.reshape(-1, NX) @ w_attn + b_attn
        qkv = qkv.reshape(B, S, 3 * NX)
        q, k, v = jnp.split(qkv, 3, axis=-1)

        def split_heads(t):
            return t.reshape(B, S, N_HEAD, NX // N_HEAD).transpose(0, 2, 1, 3)

        q, k, v = split_heads(q), split_heads(k), split_heads(v)
        w = jnp.einsum("bhqd,bhkd->bhqk", q, k)
        mask = jnp.tril(jnp.ones((S, S), dtype=bool))
        w = jnp.where(mask, w, jnp.float32(-10000.0))
        w = jax.nn.softmax(w, axis=-1)
        a = jnp.einsum("bhqk,bhkd->bhqd", w, v)
        a = a.transpose(0, 2, 1, 3).reshape(B, S, NX)
        return (a.reshape(-1, NX) @ w_proj + b_proj).reshape(B, S, NX)

    ref = ref_forward(x, w_attn, b_attn, w_proj, b_proj)
    max_err = float(jnp.max(jnp.abs(out - ref)))
    # bf16 MXU feeds + approx reciprocal => small, bounded divergence from f32 ref.
    assert max_err < 5e-3, f"max abs err {max_err}"
    print("KERNEL_OK")
</pallas_src>

<mosaic_0001>
module attributes {stable_mosaic.version = 11 : i64} {
  func.func @_fused_masked_attention_kernel(%arg0: i32, %arg1: memref<1x8x32xbf16, #tpu.memory_space<vmem>>, %arg2: memref<32x96xbf16, #tpu.memory_space<vmem>>, %arg3: memref<1x96xf32, #tpu.memory_space<vmem>>, %arg4: memref<32x32xbf16, #tpu.memory_space<vmem>>, %arg5: memref<1x32xf32, #tpu.memory_space<vmem>>, %arg6: memref<1x8x32xf32, #tpu.memory_space<vmem>>) attributes {dimension_semantics = [#tpu.dimension_semantics<parallel>], iteration_bounds = array<i64: 2>, scalar_prefetch = 0 : i64, scratch_operands = 0 : i64, tpu.core_type = #tpu.core_type<tc>, window_params = [{transform_indices = @transform_0, window_bounds = array<i64: 1, 8, 32>}, {pipeline_mode = #tpu.pipeline_mode<synchronous>, transform_indices = @transform_1, window_bounds = array<i64: 32, 96>}, {pipeline_mode = #tpu.pipeline_mode<synchronous>, transform_indices = @transform_2, window_bounds = array<i64: 1, 96>}, {pipeline_mode = #tpu.pipeline_mode<synchronous>, transform_indices = @transform_3, window_bounds = array<i64: 32, 32>}, {pipeline_mode = #tpu.pipeline_mode<synchronous>, transform_indices = @transform_4, window_bounds = array<i64: 1, 32>}, {transform_indices = @transform_5, window_bounds = array<i64: 1, 8, 32>}]} {
    %c0 = arith.constant 0 : index
    %c0_0 = arith.constant 0 : index
    %c0_1 = arith.constant 0 : index
    %0 = vector.load %arg1[%c0, %c0_0, %c0_1] : memref<1x8x32xbf16, #tpu.memory_space<vmem>>, vector<1x8x32xbf16>
    %1 = vector.shape_cast %0 : vector<1x8x32xbf16> to vector<8x32xbf16>
    %c0_2 = arith.constant 0 : index
    %c0_3 = arith.constant 0 : index
    %2 = vector.load %arg2[%c0_2, %c0_3] : memref<32x96xbf16, #tpu.memory_space<vmem>>, vector<32x96xbf16>
    %cst = arith.constant dense<0.000000e+00> : vector<8x96xf32>
    %3 = tpu.matmul %1, %2, %cst {dimension_numbers = #tpu.dot_dimension_numbers<[1], [0], [0], [1], [0, 0, 1, 1], [], []>} : vector<8x32xbf16>, vector<32x96xbf16>, vector<8x96xf32> -> vector<8x96xf32>
    %c0_4 = arith.constant 0 : index
    %c0_5 = arith.constant 0 : index
    %4 = vector.load %arg3[%c0_4, %c0_5] : memref<1x96xf32, #tpu.memory_space<vmem>>, vector<1x96xf32>
    %5 = vector.broadcast %4 : vector<1x96xf32> to vector<8x96xf32>
    %6 = arith.addf %3, %5 : vector<8x96xf32>
    %7 = arith.truncf %6 : vector<8x96xf32> to vector<8x96xbf16>
    %8 = tpu.iota {dimensions = array<i32: 0>} : vector<8x8xi32>
    %9 = tpu.iota {dimensions = array<i32: 1>} : vector<8x8xi32>
    %10 = arith.cmpi sle, %9, %8 : vector<8x8xi32>
    %c0_6 = arith.constant 0 : index
    %c0_7 = arith.constant 0 : index
    %11 = vector.load %arg4[%c0_6, %c0_7] : memref<32x32xbf16, #tpu.memory_space<vmem>>, vector<32x32xbf16>
    %cst_8 = arith.constant 0.000000e+00 : f32
    %12 = vector.broadcast %cst_8 : f32 to vector<8x32xf32>
    %13 = vector.extract_strided_slice %7 {offsets = [0, 0], sizes = [8, 8], strides = [1, 1]} : vector<8x96xbf16> to vector<8x8xbf16>
    %14 = vector.extract_strided_slice %7 {offsets = [0, 32], sizes = [8, 8], strides = [1, 1]} : vector<8x96xbf16> to vector<8x8xbf16>
    %15 = vector.extract_strided_slice %7 {offsets = [0, 64], sizes = [8, 8], strides = [1, 1]} : vector<8x96xbf16> to vector<8x8xbf16>
    %cst_9 = arith.constant dense<0.000000e+00> : vector<8x8xf32>
    %16 = tpu.matmul %13, %14, %cst_9 {dimension_numbers = #tpu.dot_dimension_numbers<[1], [1], [0], [0], [0, 0, 1, 0], [], []>} : vector<8x8xbf16>, vector<8x8xbf16>, vector<8x8xf32> -> vector<8x8xf32>
    %cst_10 = arith.constant -1.000000e+04 : f32
    %17 = vector.broadcast %cst_10 : f32 to vector<8x8xf32>
    %18 = arith.select %10, %16, %17 : vector<8x8xi1>, vector<8x8xf32>
    %cst_11 = arith.constant dense<0xFF800000> : vector<8xf32>
    %19 = vector.multi_reduction <maximumf>, %18, %cst_11 [1] : vector<8x8xf32> to vector<8xf32>
    %20 = vector.shape_cast %19 : vector<8xf32> to vector<8x1xf32>
    %21 = vector.broadcast %20 : vector<8x1xf32> to vector<8x8xf32>
    %22 = arith.subf %18, %21 : vector<8x8xf32>
    %23 = math.exp %22 : vector<8x8xf32>
    %cst_12 = arith.constant dense<0.000000e+00> : vector<8xf32>
    %24 = vector.multi_reduction <add>, %23, %cst_12 [1] : vector<8x8xf32> to vector<8xf32>
    %25 = vector.shape_cast %24 : vector<8xf32> to vector<8x1xf32>
    %26 = tpu.reciprocal %25 {approx = true} : vector<8x1xf32> -> vector<8x1xf32>
    %27 = vector.broadcast %26 : vector<8x1xf32> to vector<8x8xf32>
    %28 = arith.mulf %23, %27 : vector<8x8xf32>
    %29 = arith.truncf %28 : vector<8x8xf32> to vector<8x8xbf16>
    %cst_13 = arith.constant dense<0.000000e+00> : vector<8x8xf32>
    %30 = tpu.matmul %29, %15, %cst_13 {dimension_numbers = #tpu.dot_dimension_numbers<[1], [0], [0], [1], [0, 0, 1, 1], [], []>} : vector<8x8xbf16>, vector<8x8xbf16>, vector<8x8xf32> -> vector<8x8xf32>
    %31 = arith.truncf %30 : vector<8x8xf32> to vector<8x8xbf16>
    %32 = vector.extract_strided_slice %11 {offsets = [0, 0], sizes = [8, 32], strides = [1, 1]} : vector<32x32xbf16> to vector<8x32xbf16>
    %cst_14 = arith.constant dense<0.000000e+00> : vector<8x32xf32>
    %33 = tpu.matmul %31, %32, %cst_14 {dimension_numbers = #tpu.dot_dimension_numbers<[1], [0], [0], [1], [0, 0, 1, 1], [], []>} : vector<8x8xbf16>, vector<8x32xbf16>, vector<8x32xf32> -> vector<8x32xf32>
    %34 = arith.addf %12, %33 : vector<8x32xf32>
    %35 = vector.extract_strided_slice %7 {offsets = [0, 8], sizes = [8, 8], strides = [1, 1]} : vector<8x96xbf16> to vector<8x8xbf16>
    %36 = vector.extract_strided_slice %7 {offsets = [0, 40], sizes = [8, 8], strides = [1, 1]} : vector<8x96xbf16> to vector<8x8xbf16>
    %37 = vector.extract_strided_slice %7 {offsets = [0, 72], sizes = [8, 8], strides = [1, 1]} : vector<8x96xbf16> to vector<8x8xbf16>
    %cst_15 = arith.constant dense<0.000000e+00> : vector<8x8xf32>
    %38 = tpu.matmul %35, %36, %cst_15 {dimension_numbers = #tpu.dot_dimension_numbers<[1], [1], [0], [0], [0, 0, 1, 0], [], []>} : vector<8x8xbf16>, vector<8x8xbf16>, vector<8x8xf32> -> vector<8x8xf32>
    %cst_16 = arith.constant -1.000000e+04 : f32
    %39 = vector.broadcast %cst_16 : f32 to vector<8x8xf32>
    %40 = arith.select %10, %38, %39 : vector<8x8xi1>, vector<8x8xf32>
    %cst_17 = arith.constant dense<0xFF800000> : vector<8xf32>
    %41 = vector.multi_reduction <maximumf>, %40, %cst_17 [1] : vector<8x8xf32> to vector<8xf32>
    %42 = vector.shape_cast %41 : vector<8xf32> to vector<8x1xf32>
    %43 = vector.broadcast %42 : vector<8x1xf32> to vector<8x8xf32>
    %44 = arith.subf %40, %43 : vector<8x8xf32>
    %45 = math.exp %44 : vector<8x8xf32>
    %cst_18 = arith.constant dense<0.000000e+00> : vector<8xf32>
    %46 = vector.multi_reduction <add>, %45, %cst_18 [1] : vector<8x8xf32> to vector<8xf32>
    %47 = vector.shape_cast %46 : vector<8xf32> to vector<8x1xf32>
    %48 = tpu.reciprocal %47 {approx = true} : vector<8x1xf32> -> vector<8x1xf32>
    %49 = vector.broadcast %48 : vector<8x1xf32> to vector<8x8xf32>
    %50 = arith.mulf %45, %49 : vector<8x8xf32>
    %51 = arith.truncf %50 : vector<8x8xf32> to vector<8x8xbf16>
    %cst_19 = arith.constant dense<0.000000e+00> : vector<8x8xf32>
    %52 = tpu.matmul %51, %37, %cst_19 {dimension_numbers = #tpu.dot_dimension_numbers<[1], [0], [0], [1], [0, 0, 1, 1], [], []>} : vector<8x8xbf16>, vector<8x8xbf16>, vector<8x8xf32> -> vector<8x8xf32>
    %53 = arith.truncf %52 : vector<8x8xf32> to vector<8x8xbf16>
    %54 = vector.extract_strided_slice %11 {offsets = [8, 0], sizes = [8, 32], strides = [1, 1]} : vector<32x32xbf16> to vector<8x32xbf16>
    %cst_20 = arith.constant dense<0.000000e+00> : vector<8x32xf32>
    %55 = tpu.matmul %53, %54, %cst_20 {dimension_numbers = #tpu.dot_dimension_numbers<[1], [0], [0], [1], [0, 0, 1, 1], [], []>} : vector<8x8xbf16>, vector<8x32xbf16>, vector<8x32xf32> -> vector<8x32xf32>
    %56 = arith.addf %34, %55 : vector<8x32xf32>
    %57 = vector.extract_strided_slice %7 {offsets = [0, 16], sizes = [8, 8], strides = [1, 1]} : vector<8x96xbf16> to vector<8x8xbf16>
    %58 = vector.extract_strided_slice %7 {offsets = [0, 48], sizes = [8, 8], strides = [1, 1]} : vector<8x96xbf16> to vector<8x8xbf16>
    %59 = vector.extract_strided_slice %7 {offsets = [0, 80], sizes = [8, 8], strides = [1, 1]} : vector<8x96xbf16> to vector<8x8xbf16>
    %cst_21 = arith.constant dense<0.000000e+00> : vector<8x8xf32>
    %60 = tpu.matmul %57, %58, %cst_21 {dimension_numbers = #tpu.dot_dimension_numbers<[1], [1], [0], [0], [0, 0, 1, 0], [], []>} : vector<8x8xbf16>, vector<8x8xbf16>, vector<8x8xf32> -> vector<8x8xf32>
    %cst_22 = arith.constant -1.000000e+04 : f32
    %61 = vector.broadcast %cst_22 : f32 to vector<8x8xf32>
    %62 = arith.select %10, %60, %61 : vector<8x8xi1>, vector<8x8xf32>
    %cst_23 = arith.constant dense<0xFF800000> : vector<8xf32>
    %63 = vector.multi_reduction <maximumf>, %62, %cst_23 [1] : vector<8x8xf32> to vector<8xf32>
    %64 = vector.shape_cast %63 : vector<8xf32> to vector<8x1xf32>
    %65 = vector.broadcast %64 : vector<8x1xf32> to vector<8x8xf32>
    %66 = arith.subf %62, %65 : vector<8x8xf32>
    %67 = math.exp %66 : vector<8x8xf32>
    %cst_24 = arith.constant dense<0.000000e+00> : vector<8xf32>
    %68 = vector.multi_reduction <add>, %67, %cst_24 [1] : vector<8x8xf32> to vector<8xf32>
    %69 = vector.shape_cast %68 : vector<8xf32> to vector<8x1xf32>
    %70 = tpu.reciprocal %69 {approx = true} : vector<8x1xf32> -> vector<8x1xf32>
    %71 = vector.broadcast %70 : vector<8x1xf32> to vector<8x8xf32>
    %72 = arith.mulf %67, %71 : vector<8x8xf32>
    %73 = arith.truncf %72 : vector<8x8xf32> to vector<8x8xbf16>
    %cst_25 = arith.constant dense<0.000000e+00> : vector<8x8xf32>
    %74 = tpu.matmul %73, %59, %cst_25 {dimension_numbers = #tpu.dot_dimension_numbers<[1], [0], [0], [1], [0, 0, 1, 1], [], []>} : vector<8x8xbf16>, vector<8x8xbf16>, vector<8x8xf32> -> vector<8x8xf32>
    %75 = arith.truncf %74 : vector<8x8xf32> to vector<8x8xbf16>
    %76 = vector.extract_strided_slice %11 {offsets = [16, 0], sizes = [8, 32], strides = [1, 1]} : vector<32x32xbf16> to vector<8x32xbf16>
    %cst_26 = arith.constant dense<0.000000e+00> : vector<8x32xf32>
    %77 = tpu.matmul %75, %76, %cst_26 {dimension_numbers = #tpu.dot_dimension_numbers<[1], [0], [0], [1], [0, 0, 1, 1], [], []>} : vector<8x8xbf16>, vector<8x32xbf16>, vector<8x32xf32> -> vector<8x32xf32>
    %78 = arith.addf %56, %77 : vector<8x32xf32>
    %79 = vector.extract_strided_slice %7 {offsets = [0, 24], sizes = [8, 8], strides = [1, 1]} : vector<8x96xbf16> to vector<8x8xbf16>
    %80 = vector.extract_strided_slice %7 {offsets = [0, 56], sizes = [8, 8], strides = [1, 1]} : vector<8x96xbf16> to vector<8x8xbf16>
    %81 = vector.extract_strided_slice %7 {offsets = [0, 88], sizes = [8, 8], strides = [1, 1]} : vector<8x96xbf16> to vector<8x8xbf16>
    %cst_27 = arith.constant dense<0.000000e+00> : vector<8x8xf32>
    %82 = tpu.matmul %79, %80, %cst_27 {dimension_numbers = #tpu.dot_dimension_numbers<[1], [1], [0], [0], [0, 0, 1, 0], [], []>} : vector<8x8xbf16>, vector<8x8xbf16>, vector<8x8xf32> -> vector<8x8xf32>
    %cst_28 = arith.constant -1.000000e+04 : f32
    %83 = vector.broadcast %cst_28 : f32 to vector<8x8xf32>
    %84 = arith.select %10, %82, %83 : vector<8x8xi1>, vector<8x8xf32>
    %cst_29 = arith.constant dense<0xFF800000> : vector<8xf32>
    %85 = vector.multi_reduction <maximumf>, %84, %cst_29 [1] : vector<8x8xf32> to vector<8xf32>
    %86 = vector.shape_cast %85 : vector<8xf32> to vector<8x1xf32>
    %87 = vector.broadcast %86 : vector<8x1xf32> to vector<8x8xf32>
    %88 = arith.subf %84, %87 : vector<8x8xf32>
    %89 = math.exp %88 : vector<8x8xf32>
    %cst_30 = arith.constant dense<0.000000e+00> : vector<8xf32>
    %90 = vector.multi_reduction <add>, %89, %cst_30 [1] : vector<8x8xf32> to vector<8xf32>
    %91 = vector.shape_cast %90 : vector<8xf32> to vector<8x1xf32>
    %92 = tpu.reciprocal %91 {approx = true} : vector<8x1xf32> -> vector<8x1xf32>
    %93 = vector.broadcast %92 : vector<8x1xf32> to vector<8x8xf32>
    %94 = arith.mulf %89, %93 : vector<8x8xf32>
    %95 = arith.truncf %94 : vector<8x8xf32> to vector<8x8xbf16>
    %cst_31 = arith.constant dense<0.000000e+00> : vector<8x8xf32>
    %96 = tpu.matmul %95, %81, %cst_31 {dimension_numbers = #tpu.dot_dimension_numbers<[1], [0], [0], [1], [0, 0, 1, 1], [], []>} : vector<8x8xbf16>, vector<8x8xbf16>, vector<8x8xf32> -> vector<8x8xf32>
    %97 = arith.truncf %96 : vector<8x8xf32> to vector<8x8xbf16>
    %98 = vector.extract_strided_slice %11 {offsets = [24, 0], sizes = [8, 32], strides = [1, 1]} : vector<32x32xbf16> to vector<8x32xbf16>
    %cst_32 = arith.constant dense<0.000000e+00> : vector<8x32xf32>
    %99 = tpu.matmul %97, %98, %cst_32 {dimension_numbers = #tpu.dot_dimension_numbers<[1], [0], [0], [1], [0, 0, 1, 1], [], []>} : vector<8x8xbf16>, vector<8x32xbf16>, vector<8x32xf32> -> vector<8x32xf32>
    %100 = arith.addf %78, %99 : vector<8x32xf32>
    %c0_33 = arith.constant 0 : index
    %c0_34 = arith.constant 0 : index
    %101 = vector.load %arg5[%c0_33, %c0_34] : memref<1x32xf32, #tpu.memory_space<vmem>>, vector<1x32xf32>
    %102 = vector.broadcast %101 : vector<1x32xf32> to vector<8x32xf32>
    %103 = arith.addf %100, %102 : vector<8x32xf32>
    %c0_35 = arith.constant 0 : index
    %c0_36 = arith.constant 0 : index
    %c0_37 = arith.constant 0 : index
    %104 = vector.load %arg6[%c0_35, %c0_36, %c0_37] : memref<1x8x32xf32, #tpu.memory_space<vmem>>, vector<1x8x32xf32>
    %105 = vector.shape_cast %104 : vector<1x8x32xf32> to vector<8x32xf32>
    %106 = vector.shape_cast %103 : vector<8x32xf32> to vector<1x8x32xf32>
    tpu.vector_store %arg6[%c0_35, %c0_36, %c0_37], %106 {strides = array<i32>} : memref<1x8x32xf32, #tpu.memory_space<vmem>>, vector<1x8x32xf32>,
    return
  }
  func.func @transform_0(%arg0: i32) -> (i32, i32, i32) {
    %c0_i32 = arith.constant 0 : i32
    %c0_i32_0 = arith.constant 0 : i32
    %c0_i32_1 = arith.constant 0 : i32
    return %arg0, %c0_i32, %c0_i32_0 : i32, i32, i32
  }
  func.func @transform_1(%arg0: i32) -> (i32, i32) {
    %c0_i32 = arith.constant 0 : i32
    %c0_i32_0 = arith.constant 0 : i32
    %c0_i32_1 = arith.constant 0 : i32
    return %c0_i32, %c0_i32_0 : i32, i32
  }
  func.func @transform_2(%arg0: i32) -> (i32, i32) {
    %c0_i32 = arith.constant 0 : i32
    %c0_i32_0 = arith.constant 0 : i32
    %c0_i32_1 = arith.constant 0 : i32
    return %c0_i32, %c0_i32_0 : i32, i32
  }
  func.func @transform_3(%arg0: i32) -> (i32, i32) {
    %c0_i32 = arith.constant 0 : i32
    %c0_i32_0 = arith.constant 0 : i32
    %c0_i32_1 = arith.constant 0 : i32
    return %c0_i32, %c0_i32_0 : i32, i32
  }
  func.func @transform_4(%arg0: i32) -> (i32, i32) {
    %c0_i32 = arith.constant 0 : i32
    %c0_i32_0 = arith.constant 0 : i32
    %c0_i32_1 = arith.constant 0 : i32
    return %c0_i32, %c0_i32_0 : i32, i32
  }
  func.func @transform_5(%arg0: i32) -> (i32, i32, i32) {
    %c0_i32 = arith.constant 0 : i32
    %c0_i32_0 = arith.constant 0 : i32
    %c0_i32_1 = arith.constant 0 : i32
    return %arg0, %c0_i32, %c0_i32_0 : i32, i32, i32
  }
}

</mosaic_0001>

<llo_original>
// kernel: tpu_custom_call.1
$region0: #{tpu_custom_call.1}
  #allocation0 [shape = 'u32[]', space=smem, size = 0x4, offset = 0x4, fixed_abs, tag = 'smem constant byte address 0x4 - core index']
  #allocation1 [shape = 'u32[144,128]{1,0:T(1,128)}', space=vmem, size = 0x12000, scoped, tag = 'internal scratch']
  %s0 = inlined_call_operand.hbm [shape: bf16[2,8,32], index: 0, kind: input, shape index: {}]
  %s1 = inlined_call_operand.hbm [shape: bf16[32,96], index: 1, kind: input, shape index: {}]
  %s2 = inlined_call_operand.vmem [shape: f32[1,96], index: 2, kind: input, shape index: {}]
  %s3 = inlined_call_operand.hbm [shape: bf16[32,32], index: 3, kind: input, shape index: {}]
  %s4 = inlined_call_operand.vmem [shape: f32[1,32], index: 4, kind: input, shape index: {}]
  %s5 = inlined_call_operand.hbm [shape: f32[2,8,32], index: 5, kind: output, shape index: {}]
  %s6 = sld [smem:[#allocation0]]
  $region65: #{tpu_custom_call.1} parent=0
    _
  %s8 = ssub.s32 1, %s6
  %s9 = scalar_select 0, %s8, %s6
  $region1: #{tpu_custom_call.1} parent=0
    #allocation2 [shape = 'u8[4096]{0}', space=vmem, size = 0x1000, scoped, tag = 'input window, operand 0']
    #allocation3 [shape = 's32[2]{0}', space=sflag, size = 0x8, scoped, tag = 'scoped memory for tpu_custom_call.1']
    #allocation4 [shape = 's32[2]{0}', space=sflag, size = 0x8, scoped, tag = 'scoped memory for tpu_custom_call.1']
    #allocation5 [shape = 'u8[8192]{0}', space=vmem, size = 0x2000, scoped, tag = 'input window, operand 1, single buffered']
    #allocation6 [shape = 's32[1]{0}', space=sflag, size = 0x4, scoped, tag = 'scoped memory for tpu_custom_call.1']
    #allocation7 [shape = 'u8[8192]{0}', space=vmem, size = 0x2000, scoped, tag = 'input window, operand 3, single buffered']
    #allocation8 [shape = 'u8[8192]{0}', space=vmem, size = 0x2000, scoped, tag = 'output window, operand 0']
    %10 = vsyncpa [#allocation3], 0
    %s11 = scalar_lea.sflag [#allocation3], 1
    %12 = vsyncpa %s11, 0
    %13 = vsyncpa [#allocation6], 0
    %14 = vsyncpa [#allocation4], 0
    %s15 = scalar_lea.sflag [#allocation4], 1
    %16 = vsyncpa %s15, 0
    loop: start=0, step=1, limit=4
    $region2: #{tpu_custom_call.1} parent=1 // loop_pre_header
      _
    $region3: #{tpu_custom_call.1} parent=1 // loop_header
      %s18 = sphi 0, %s22
      %p19 = scmp.ge.s32.totalorder %s18, 4
      %s28 = sphi 0, %s30
      %s31 = sphi 0, %s28
      %s32 = sphi 0, %s31
      %s48 = sphi 0, %s32
      %s52 = sphi 0, %s52
      %s54 = sphi 0, %s52
      %s55 = sphi 0, %s54
      %s69 = sphi 0, %s55
      %s73 = sphi 0, %s73
      %s75 = sphi 0, %s73
      %s76 = sphi 0, %s75
      %s90 = sphi 0, %s76
      %s94 = sphi 0, %s94
      %s96 = sphi 0, %s94
      %s97 = sphi 0, %s96
      %s111 = sphi 0, %s97
      %s115 = sphi 0, %s115
      %s117 = sphi 0, %s115
      %s118 = sphi 0, %s117
      %s132 = sphi 0, %s118
      %s138 = sphi 0, %s140
      %s141 = sphi 0, %s138
      %s142 = sphi 0, %s141
      %s158 = sphi 0, %s142
    $region4: #{tpu_custom_call.1} parent=1 // loop_header_branch
      %21 = sbr.rel (%p19) target = $region8
    $region5: #{tpu_custom_call.1} parent=1 // loop_body
      %s23 = ssub.s32 %s18, 1
      %s24 = ssub.s32 %s18, 2
      %s25 = sadd.s32 %s18, 1
      %s26 = ssub.s32 %s18, %s25
      %p27 = scmp.eq.s32.totalorder %s26, 0
      %s29 = sadd.s32 %s28, 1
      %s30 = scalar_select %p27, %s28, %s29
      %p33 = pneg %p27
      %p34 = scmp.eq.s32.totalorder %s18, 1
      %p35 = por %p33, %p34
      %p36 = scmp.ne.s32.totalorder %s28, %s31
      %p37 = scmp.eq.s32.totalorder %s18, 0
      %p38 = por %p36, %p37
      %p39 = scmp.ne.s32.totalorder %s28, %s31
      %p40 = scmp.eq.s32.totalorder %s23, 1
      %p41 = por %p39, %p40
      %p42 = scmp.ne.s32.totalorder %s31, %s32
      %p43 = scmp.eq.s32.totalorder %s23, 0
      %p44 = por %p42, %p43
      %p45 = scmp.ne.s32.totalorder %s31, %s32
      %p46 = scmp.eq.s32.totalorder %s24, 1
      %p47 = por %p45, %p46
      %p49 = scmp.ne.s32.totalorder %s32, %s48
      %p50 = scmp.eq.s32.totalorder %s24, 0
      %p51 = por %p49, %p50
      %s53 = sadd.s32 %s52, 1
      %p56 = scmp.eq.s32.totalorder %s18, 1
      %p57 = scmp.ne.s32.totalorder %s52, %s54
      %p58 = scmp.eq.s32.totalorder %s18, 0
      %p59 = por %p57, %p58
      %p60 = scmp.ne.s32.totalorder %s52, %s54
      %p61 = scmp.eq.s32.totalorder %s23, 1
      %p62 = por %p60, %p61
      %p63 = scmp.ne.s32.totalorder %s54, %s55
      %p64 = scmp.eq.s32.totalorder %s23, 0
      %p65 = por %p63, %p64
      %p66 = scmp.ne.s32.totalorder %s54, %s55
      %p67 = scmp.eq.s32.totalorder %s24, 1
      %p68 = por %p66, %p67
      %p70 = scmp.ne.s32.totalorder %s55, %s69
      %p71 = scmp.eq.s32.totalorder %s24, 0
      %p72 = por %p70, %p71
      %s74 = sadd.s32 %s73, 1
      %p77 = scmp.eq.s32.totalorder %s18, 1
      %p78 = scmp.ne.s32.totalorder %s73, %s75
      %p79 = scmp.eq.s32.totalorder %s18, 0
      %p80 = por %p78, %p79
      %p81 = scmp.ne.s32.totalorder %s73, %s75
      %p82 = scmp.eq.s32.totalorder %s23, 1
      %p83 = por %p81, %p82
      %p84 = scmp.ne.s32.totalorder %s75, %s76
      %p85 = scmp.eq.s32.totalorder %s23, 0
      %p86 = por %p84, %p85
      %p87 = scmp.ne.s32.totalorder %s75, %s76
      %p88 = scmp.eq.s32.totalorder %s24, 1
      %p89 = por %p87, %p88
      %p91 = scmp.ne.s32.totalorder %s76, %s90
      %p92 = scmp.eq.s32.totalorder %s24, 0
      %p93 = por %p91, %p92
      %s95 = sadd.s32 %s94, 1
      %p98 = scmp.eq.s32.totalorder %s18, 1
      %p99 = scmp.ne.s32.totalorder %s94, %s96
      %p100 = scmp.eq.s32.totalorder %s18, 0
      %p101 = por %p99, %p100
      %p102 = scmp.ne.s32.totalorder %s94, %s96
      %p103 = scmp.eq.s32.totalorder %s23, 1
      %p104 = por %p102, %p103
      %p105 = scmp.ne.s32.totalorder %s96, %s97
      %p106 = scmp.eq.s32.totalorder %s23, 0
      %p107 = por %p105, %p106
      %p108 = scmp.ne.s32.totalorder %s96, %s97
      %p109 = scmp.eq.s32.totalorder %s24, 1
      %p110 = por %p108, %p109
      %p112 = scmp.ne.s32.totalorder %s97, %s111
      %p113 = scmp.eq.s32.totalorder %s24, 0
      %p114 = por %p112, %p113
      %s116 = sadd.s32 %s115, 1
      %p119 = scmp.eq.s32.totalorder %s18, 1
      %p120 = scmp.ne.s32.totalorder %s115, %s117
      %p121 = scmp.eq.s32.totalorder %s18, 0
      %p122 = por %p120, %p121
      %p123 = scmp.ne.s32.totalorder %s115, %s117
      %p124 = scmp.eq.s32.totalorder %s23, 1
      %p125 = por %p123, %p124
      %p126 = scmp.ne.s32.totalorder %s117, %s118
      %p127 = scmp.eq.s32.totalorder %s23, 0
      %p128 = por %p126, %p127
      %p129 = scmp.ne.s32.totalorder %s117, %s118
      %p130 = scmp.eq.s32.totalorder %s24, 1
      %p131 = por %p129, %p130
      %p133 = scmp.ne.s32.totalorder %s118, %s132
      %p134 = scmp.eq.s32.totalorder %s24, 0
      %p135 = por %p133, %p134
      %s136 = ssub.s32 %s18, %s25
      %p137 = scmp.eq.s32.totalorder %s136, 0
      %s139 = sadd.s32 %s138, 1
      %s140 = scalar_select %p137, %s138, %s139
      %p143 = pneg %p137
      %p144 = scmp.eq.s32.totalorder %s18, 1
      %p145 = por %p143, %p144
      %p146 = scmp.ne.s32.totalorder %s138, %s141
      %p147 = scmp.eq.s32.totalorder %s18, 0
      %p148 = por %p146, %p147
      %p149 = scmp.ne.s32.totalorder %s138, %s141
      %p150 = scmp.eq.s32.totalorder %s23, 1
      %p151 = por %p149, %p150
      %p152 = scmp.ne.s32.totalorder %s141, %s142
      %p153 = scmp.eq.s32.totalorder %s23, 0
      %p154 = por %p152, %p153
      %p155 = scmp.ne.s32.totalorder %s141, %s142
      %p156 = scmp.eq.s32.totalorder %s24, 1
      %p157 = por %p155, %p156
      %p159 = scmp.ne.s32.totalorder %s142, %s158
      %p160 = scmp.eq.s32.totalorder %s24, 0
      %p161 = por %p159, %p160
      %p162 = scmp.le.s32.totalorder 1, %s18
      %p163 = scmp.lt.s32.totalorder %s18, 3
      %p164 = pnand %p162, %p163
      %p165 = pneg %p164
      // Predicated region
      $region9: #{tpu_custom_call.1} parent=5 // pred_check
        _
      $region10: #{tpu_custom_call.1} parent=5 // pred_check_branch
        %167 = sbr.rel (%p164) target = $region12
      $region11: #{tpu_custom_call.1} parent=5 // pred_region
        %s168 = ssub.s32 %s18, 1
        // Predicated region
        $region13: #{tpu_custom_call.1} parent=11 // pred_check
          %p169 = pneg %p65
        $region14: #{tpu_custom_call.1} parent=11 // pred_check_branch
          %171 = sbr.rel (%p169) target = $region16
        $region15: #{tpu_custom_call.1} parent=11 // pred_region
          %s173 = ssub.s32 256, 256
          %174 = vsyncadd [#allocation6], %s173
          %s175 = sshll.u32 [#allocation5], 4
          %s176 = int_to_ptr.vmem [resolvable:$true] %s175
          %181 = dma.hbm_to_vmem [thread:$0]  %s1, 256, %s176, [#allocation6], 64, 64, 4
        $region16: #{tpu_custom_call.1} parent=11 // pred_fallthru
          _
        // Predicated region
        $region17: #{tpu_custom_call.1} parent=11 // pred_check
          %p182 = pneg %p86
        $region18: #{tpu_custom_call.1} parent=11 // pred_check_branch
          %184 = sbr.rel (%p182) target = $region20
        $region19: #{tpu_custom_call.1} parent=11 // pred_region
          _
        $region20: #{tpu_custom_call.1} parent=11 // pred_fallthru
          _
        // Predicated region
        $region21: #{tpu_custom_call.1} parent=11 // pred_check
          %p185 = pneg %p107
        $region22: #{tpu_custom_call.1} parent=11 // pred_check_branch
          %187 = sbr.rel (%p185) target = $region24
        $region23: #{tpu_custom_call.1} parent=11 // pred_region
          %s189 = ssub.s32 256, 256
          %190 = vsyncadd [#allocation6], %s189
          %s191 = sshll.u32 [#allocation7], 4
          %s192 = int_to_ptr.vmem [resolvable:$true] %s191
          %197 = dma.hbm_to_vmem [thread:$0]  %s3, 256, %s192, [#allocation6], 64, 64, 4
        $region24: #{tpu_custom_call.1} parent=11 // pred_fallthru
          _
        // Predicated region
        $region25: #{tpu_custom_call.1} parent=11 // pred_check
          %p198 = pneg %p128
        $region26: #{tpu_custom_call.1} parent=11 // pred_check_branch
          %200 = sbr.rel (%p198) target = $region28
        $region27: #{tpu_custom_call.1} parent=11 // pred_region
          _
        $region28: #{tpu_custom_call.1} parent=11 // pred_fallthru
          _
      $region12: #{tpu_custom_call.1} parent=5 // pred_fallthru
        _
      %p201 = scmp.lt.s32.totalorder %s18, 2
      // Predicated region
      $region29: #{tpu_custom_call.1} parent=5 // pred_check
        %p202 = pneg %p201
      $region30: #{tpu_custom_call.1} parent=5 // pred_check_branch
        %204 = sbr.rel (%p202) target = $region32
      $region31: #{tpu_custom_call.1} parent=5 // pred_region
        // Predicated region
        $region33: #{tpu_custom_call.1} parent=31 // pred_check
          %p205 = pneg %p38
        $region34: #{tpu_custom_call.1} parent=31 // pred_check_branch
          %207 = sbr.rel (%p205) target = $region36
        $region35: #{tpu_custom_call.1} parent=31 // pred_region
          %s208 = sand.u32 %s28, 1
          %s209 = scalar_lea.sflag [#allocation3], %s208
          %s210 = sand.u32 %s28, 1
          %s211 = smul.addr %s210, 4
          %s212 = scalar_lea.vmem [#allocation2], %s211
          %s214 = ssub.s32 64, 64
          %215 = vsyncadd %s209, %s214
          %s216 = smul.addr %s18, 64
          %s217 = scalar_lea.hbm %s0, %s216
          %s219 = sshll.u32 %s212, 4
          %s220 = int_to_ptr.vmem [resolvable:$true] %s219
          %222 = dma.hbm_to_vmem [thread:$0]  %s217, 64, %s220, %s209
        $region36: #{tpu_custom_call.1} parent=31 // pred_fallthru
          _
      $region32: #{tpu_custom_call.1} parent=5 // pred_fallthru
        _
      %p223 = scmp.le.s32.totalorder 1, %s18
      %p224 = scmp.lt.s32.totalorder %s18, 3
      %p225 = pnand %p223, %p224
      %p226 = pneg %p225
      // Predicated region
      $region37: #{tpu_custom_call.1} parent=5 // pred_check
        _
      $region38: #{tpu_custom_call.1} parent=5 // pred_check_branch
        %228 = sbr.rel (%p225) target = $region40
      $region39: #{tpu_custom_call.1} parent=5 // pred_region
        %s229 = ssub.s32 %s18, 1
        %s230 = sand.u32 %s31, 1
        %s231 = scalar_lea.sflag [#allocation3], %s230
        %s232 = sand.u32 %s31, 1
        %s233 = smul.addr %s232, 4
        %s234 = scalar_lea.vmem [#allocation2], %s233
        // Predicated region
        $region41: #{tpu_custom_call.1} parent=39 // pred_check
          %p235 = pneg %p44
        $region42: #{tpu_custom_call.1} parent=39 // pred_check_branch
          %237 = sbr.rel (%p235) target = $region44
        $region43: #{tpu_custom_call.1} parent=39 // pred_region
          %238 = dma.done %s231, 64
        $region44: #{tpu_custom_call.1} parent=39 // pred_fallthru
          _
        // Predicated region
        $region45: #{tpu_custom_call.1} parent=39 // pred_check
          %p239 = pneg %p65
        $region46: #{tpu_custom_call.1} parent=39 // pred_check_branch
          %241 = sbr.rel (%p239) target = $region48
        $region47: #{tpu_custom_call.1} parent=39 // pred_region
          %242 = dma.done [#allocation6], 256
        $region48: #{tpu_custom_call.1} parent=39 // pred_fallthru
          _
        // Predicated region
        $region49: #{tpu_custom_call.1} parent=39 // pred_check
          %p243 = pneg %p107
        $region50: #{tpu_custom_call.1} parent=39 // pred_check_branch
          %245 = sbr.rel (%p243) target = $region52
        $region51: #{tpu_custom_call.1} parent=39 // pred_region
          %246 = dma.done [#allocation6], 256
        $region52: #{tpu_custom_call.1} parent=39 // pred_fallthru
          _
        %s247 = sand.u32 %s31, 1
        %s248 = scalar_lea.sflag [#allocation3], %s247
        %s249 = sand.u32 %s31, 1
        %s250 = smul.addr %s249, 4
        %s251 = scalar_lea.vmem [#allocation2], %s250
        %p252 = pneg %p44
        %p253 = pneg %p41
        %p254 = pneg %p65
        %p255 = pneg %p62
        %p256 = pneg %p86
        %p257 = pneg %p83
        %p258 = pneg %p107
        %p259 = pneg %p104
        %p260 = pneg %p128
        %p261 = pneg %p125
        %p262 = pneg %p154
        %p263 = pneg %p151
        %s264 = sand.u32 %s141, 1
        %s265 = scalar_lea.sflag [#allocation4], %s264
        %s266 = sand.u32 %s141, 1
        %s267 = smul.addr %s266, 8
        %s268 = scalar_lea.vmem [#allocation8], %s267
        %v270 = vld [vmem:[%s234] sm:$0xf]
        %v271 = vld [vmem:[#allocation5] sm:$0xf]
        %v272 = vld [vmem:[#allocation5 + $0x4] sm:$0xf]
        %v273 = vld [vmem:[#allocation5 + $0x8] sm:$0xf]
        %v274 = vld [vmem:[#allocation5 + $0xc] sm:$0xf]
        %v275 = vld [vmem:[%s2] sm:$0x1]
        %v277 = vlaneseq
        %v278 = vshrl.u32 %v277, 7
        %v279 = vsub.s32 0, %v278
        %v280 = vrot.slane %v275, %v279
        %v286 = vunpack.c.l.b16 %v271
        %v287 = vunpack.c.l.b16 %v272
        %v288 = vunpack.c.l.b16 %v273
        %v289 = vunpack.c.l.b16 %v274
        %v290 = vpack.c.b16 %v287, %v286
        %v291 = vpack.c.b16 %v289, %v288
        %vm294 = vcmask 261120
        %v296 = vsel %vm294, %v270, 0
        %298 = vmatprep.subr.bf16.mxu0 0
        %299 = vmatpush1.bf16.msra.mxu0 %v290
        %300 = vmatprep.subr.bf16.mxu0 0
        %301 = vmatpush1.bf16.msra.mxu0 %v291
        %302 = vmatprep.subr.bf16.mxu0 0
        %303 = vmatpush1.bf16.msra.mxu0 0
        %304 = vmatprep.subr.bf16.mxu0 0
        %305 = vmatpush1.bf16.msra.mxu0 0
        %306 = vmatprep.subr.bf16.mxu0 0
        %307 = vmatpush1.bf16.msra.mxu0 0
        %308 = vmatprep.subr.bf16.mxu0 0
        %309 = vmatpush1.bf16.msra.mxu0 0
        %310 = vmatprep.subr.bf16.mxu0 0
        %311 = vmatpush1.bf16.msra.mxu0 0
        %312 = vmatprep.subr.bf16.mxu0 0
        %313 = vmatpush1.bf16.msra.mxu0 0
        %314 = vmatprep.subr.bf16.mxu0 0
        %315 = vmatpush1.bf16.msra.mxu0 0
        %316 = vmatprep.subr.bf16.mxu0 0
        %317 = vmatpush1.bf16.msra.mxu0 0
        %318 = vmatprep.subr.bf16.mxu0 0
        %319 = vmatpush1.bf16.msra.mxu0 0
        %320 = vmatprep.subr.bf16.mxu0 0
        %321 = vmatpush1.bf16.msra.mxu0 0
        %322 = vmatprep.subr.bf16.mxu0 0
        %323 = vmatpush1.bf16.msra.mxu0 0
        %324 = vmatprep.subr.bf16.mxu0 0
        %325 = vmatpush1.bf16.msra.mxu0 0
        %326 = vmatprep.subr.bf16.mxu0 0
        %327 = vmatpush1.bf16.msra.mxu0 0
        %328 = vmatprep.subr.bf16.mxu0 0
        %329 = vmatpush1.bf16.msra.mxu0 0
        %330 = vmatprep.mubr.bf16.mxu0 0
        %331 = vmatmul.mubr.bf16.gmra.mrb[0].mxu0 %v296
        %v332 = vpop.f32.mrb[0].mxu0
        %v333 = vadd.f32 %v280, %v332
        %v334 = vpop.f32.mrb[0].mxu0
        %v335 = vpop.f32.mrb[0].mxu0
        %v336 = vpop.f32.mrb[0].mxu0
        %337 = vdwg.mxu0
        %v338 = vpack.c.bf16 %v333, %v333
        %v339 = vlaneseq
        %v340 = vshrl.u32 %v339, 7
        %v341 = vlaneseq
        %v342 = vand.u32 %v341, 127
        %vm343 = vcmp.le.s32.totalorder %v342, %v340
        %v344 = vld [vmem:[#allocation7] sm:$0xf]
        %v345 = vld [vmem:[#allocation7 + $0x4] sm:$0xf]
        %v346 = vld [vmem:[#allocation7 + $0x8] sm:$0xf]
        %v347 = vld [vmem:[#allocation7 + $0xc] sm:$0xf]
        %349 = vrot.lane.b32.xlu0 %v338, 96
        %v350 = vpop.permute.xlu0 %349
        %vm351 = vcmask 64512
        %v353 = vsel %vm351, %v338, 0
        %v356 = vsel %vm351, %v350, 0
        %358 = vmatprep.subr.bf16.mxu0 0
        %359 = vmatpush1.bf16.xpose.msra.mxu0 %v356
        %360 = vmatprep.subr.bf16.mxu0 0
        %361 = vmatpush1.bf16.xpose.msra.mxu0 0
        %362 = vmatprep.subr.bf16.mxu0 0
        %363 = vmatpush1.bf16.xpose.msra.mxu0 0
        %364 = vmatprep.subr.bf16.mxu0 0
        %365 = vmatpush1.bf16.xpose.msra.mxu0 0
        %366 = vmatprep.subr.bf16.mxu0 0
        %367 = vmatpush1.bf16.xpose.msra.mxu0 0
        %368 = vmatprep.subr.bf16.mxu0 0
        %369 = vmatpush1.bf16.xpose.msra.mxu0 0
        %370 = vmatprep.subr.bf16.mxu0 0
        %371 = vmatpush1.bf16.xpose.msra.mxu0 0
        %372 = vmatprep.subr.bf16.mxu0 0
        %373 = vmatpush1.bf16.xpose.msra.mxu0 0
        %374 = vmatprep.subr.bf16.mxu0 0
        %375 = vmatpush1.bf16.xpose.msra.mxu0 0
        %376 = vmatprep.subr.bf16.mxu0 0
        %377 = vmatpush1.bf16.xpose.msra.mxu0 0
        %378 = vmatprep.subr.bf16.mxu0 0
        %379 = vmatpush1.bf16.xpose.msra.mxu0 0
        %380 = vmatprep.subr.bf16.mxu0 0
        %381 = vmatpush1.bf16.xpose.msra.mxu0 0
        %382 = vmatprep.subr.bf16.mxu0 0
        %383 = vmatpush1.bf16.xpose.msra.mxu0 0
        %384 = vmatprep.subr.bf16.mxu0 0
        %385 = vmatpush1.bf16.xpose.msra.mxu0 0
        %386 = vmatprep.subr.bf16.mxu0 0
        %387 = vmatpush1.bf16.xpose.msra.mxu0 0
        %388 = vmatprep.subr.bf16.mxu0 0
        %389 = vmatpush1.bf16.xpose.msra.mxu0 0
        %390 = vmatprep.mubr.bf16.mxu0 0
        %391 = vmatmul.mubr.bf16.gmra.mrb[0].mxu0 %v353
        %v392 = vpop.f32.mrb[0].mxu0
        %v393 = vadd.f32 0.0, %v392
        %v394 = vpop.f32.mrb[0].mxu0
        %v395 = vpop.f32.mrb[0].mxu0
        %v396 = vpop.f32.mrb[0].mxu0
        %397 = vdwg.mxu0
        %v398 = vsel %vm343, %v393, -10000.0
        %v399 = vsel %vm351, %v398, -inf
        %400 = vmax.xlane.f32.xlu0 %v399
        %v401 = vpop.xlane.xlu0 %400
        %v402 = vsub.f32 %v398, %v401
        %v403 = vmul.f32 %v402, 1.442695
        %v404 = vpow.pop %v403
        %v405 = vsel %vm351, %v404, 0.0
        %406 = vadd.xlane.f32.xlu0 %v405
        %v407 = vpop.xlane.xlu0 %406
        %v408 = vrcp.pop %v407
        %v409 = vmul.f32 %v404, %v408
        %v410 = vpack.c.bf16 %v409, %v409
        %411 = vrot.lane.b32.xlu0 %v338, 64
        %v412 = vpop.permute.xlu0 %411
        %v414 = vsel %vm351, %v410, 0
        %vm416 = vcmask 1043456
        %v418 = vsel %vm416, %v412, 0
        %420 = vmatprep.subr.bf16.mxu0 0
        %421 = vmatpush1.bf16.msra.mxu0 %v418
        %422 = vmatprep.subr.bf16.mxu0 0
        %423 = vmatpush1.bf16.msra.mxu0 0
        %424 = vmatprep.subr.bf16.mxu0 0
        %425 = vmatpush1.bf16.msra.mxu0 0
        %426 = vmatprep.subr.bf16.mxu0 0
        %427 = vmatpush1.bf16.msra.mxu0 0
        %428 = vmatprep.subr.bf16.mxu0 0
        %429 = vmatpush1.bf16.msra.mxu0 0
        %430 = vmatprep.subr.bf16.mxu0 0
        %431 = vmatpush1.bf16.msra.mxu0 0
        %432 = vmatprep.subr.bf16.mxu0 0
        %433 = vmatpush1.bf16.msra.mxu0 0
        %434 = vmatprep.subr.bf16.mxu0 0
        %435 = vmatpush1.bf16.msra.mxu0 0
        %436 = vmatprep.subr.bf16.mxu0 0
        %437 = vmatpush1.bf16.msra.mxu0 0
        %438 = vmatprep.subr.bf16.mxu0 0
        %439 = vmatpush1.bf16.msra.mxu0 0
        %440 = vmatprep.subr.bf16.mxu0 0
        %441 = vmatpush1.bf16.msra.mxu0 0
        %442 = vmatprep.subr.bf16.mxu0 0
        %443 = vmatpush1.bf16.msra.mxu0 0
        %444 = vmatprep.subr.bf16.mxu0 0
        %445 = vmatpush1.bf16.msra.mxu0 0
        %446 = vmatprep.subr.bf16.mxu0 0
        %447 = vmatpush1.bf16.msra.mxu0 0
        %448 = vmatprep.subr.bf16.mxu0 0
        %449 = vmatpush1.bf16.msra.mxu0 0
        %450 = vmatprep.subr.bf16.mxu0 0
        %451 = vmatpush1.bf16.msra.mxu0 0
        %452 = vmatprep.mubr.bf16.mxu0 0
        %453 = vmatmul.mubr.bf16.gmra.mrb[0].mxu0 %v414
        %v454 = vpop.f32.mrb[0].mxu0
        %v455 = vadd.f32 0.0, %v454
        %v456 = vpop.f32.mrb[0].mxu0
        %v457 = vpop.f32.mrb[0].mxu0
        %v458 = vpop.f32.mrb[0].mxu0
        %459 = vdwg.mxu0
        %v460 = vpack.c.bf16 %v455, %v455
        %461 = vrot.lane.b32.xlu0 %v338, 120
        %v462 = vpop.permute.xlu0 %461
        %463 = vrot.lane.b32.xlu0 %v338, 88
        %v464 = vpop.permute.xlu0 %463
        %v466 = vsel %vm351, %v462, 0
        %v469 = vsel %vm351, %v464, 0
        %471 = vmatprep.subr.bf16.mxu0 0
        %472 = vmatpush1.bf16.xpose.msra.mxu0 %v469
        %473 = vmatprep.subr.bf16.mxu0 0
        %474 = vmatpush1.bf16.xpose.msra.mxu0 0
        %475 = vmatprep.subr.bf16.mxu0 0
        %476 = vmatpush1.bf16.xpose.msra.mxu0 0
        %477 = vmatprep.subr.bf16.mxu0 0
        %478 = vmatpush1.bf16.xpose.msra.mxu0 0
        %479 = vmatprep.subr.bf16.mxu0 0
        %480 = vmatpush1.bf16.xpose.msra.mxu0 0
        %481 = vmatprep.subr.bf16.mxu0 0
        %482 = vmatpush1.bf16.xpose.msra.mxu0 0
        %483 = vmatprep.subr.bf16.mxu0 0
        %484 = vmatpush1.bf16.xpose.msra.mxu0 0
        %485 = vmatprep.subr.bf16.mxu0 0
        %486 = vmatpush1.bf16.xpose.msra.mxu0 0
        %487 = vmatprep.subr.bf16.mxu0 0
        %488 = vmatpush1.bf16.xpose.msra.mxu0 0
        %489 = vmatprep.subr.bf16.mxu0 0
        %490 = vmatpush1.bf16.xpose.msra.mxu0 0
        %491 = vmatprep.subr.bf16.mxu0 0
        %492 = vmatpush1.bf16.xpose.msra.mxu0 0
        %493 = vmatprep.subr.bf16.mxu0 0
        %494 = vmatpush1.bf16.xpose.msra.mxu0 0
        %495 = vmatprep.subr.bf16.mxu0 0
        %496 = vmatpush1.bf16.xpose.msra.mxu0 0
        %497 = vmatprep.subr.bf16.mxu0 0
        %498 = vmatpush1.bf16.xpose.msra.mxu0 0
        %499 = vmatprep.subr.bf16.mxu0 0
        %500 = vmatpush1.bf16.xpose.msra.mxu0 0
        %501 = vmatprep.subr.bf16.mxu0 0
        %502 = vmatpush1.bf16.xpose.msra.mxu0 0
        %503 = vmatprep.mubr.bf16.mxu0 0
        %504 = vmatmul.mubr.bf16.gmra.mrb[0].mxu0 %v466
        %v505 = vpop.f32.mrb[0].mxu0
        %v506 = vadd.f32 0.0, %v505
        %v507 = vpop.f32.mrb[0].mxu0
        %v508 = vpop.f32.mrb[0].mxu0
        %v509 = vpop.f32.mrb[0].mxu0
        %510 = vdwg.mxu0
        %v511 = vsel %vm343, %v506, -10000.0
        %v512 = vsel %vm351, %v511, -inf
        %513 = vmax.xlane.f32.xlu0 %v512
        %v514 = vpop.xlane.xlu0 %513
        %v515 = vsub.f32 %v511, %v514
        %v516 = vmul.f32 %v515, 1.442695
        %v517 = vpow.pop %v516
        %v518 = vsel %vm351, %v517, 0.0
        %519 = vadd.xlane.f32.xlu0 %v518
        %v520 = vpop.xlane.xlu0 %519
        %v521 = vrcp.pop %v520
        %v522 = vmul.f32 %v517, %v521
        %v523 = vpack.c.bf16 %v522, %v522
        %524 = vrot.lane.b32.xlu0 %v338, 56
        %v525 = vpop.permute.xlu0 %524
        %v527 = vsel %vm351, %v523, 0
        %v530 = vsel %vm416, %v525, 0
        %532 = vmatprep.subr.bf16.mxu0 0
        %533 = vmatpush1.bf16.msra.mxu0 %v530
        %534 = vmatprep.subr.bf16.mxu0 0
        %535 = vmatpush1.bf16.msra.mxu0 0
        %536 = vmatprep.subr.bf16.mxu0 0
        %537 = vmatpush1.bf16.msra.mxu0 0
        %538 = vmatprep.subr.bf16.mxu0 0
        %539 = vmatpush1.bf16.msra.mxu0 0
        %540 = vmatprep.subr.bf16.mxu0 0
        %541 = vmatpush1.bf16.msra.mxu0 0
        %542 = vmatprep.subr.bf16.mxu0 0
        %543 = vmatpush1.bf16.msra.mxu0 0
        %544 = vmatprep.subr.bf16.mxu0 0
        %545 = vmatpush1.bf16.msra.mxu0 0
        %546 = vmatprep.subr.bf16.mxu0 0
        %547 = vmatpush1.bf16.msra.mxu0 0
        %548 = vmatprep.subr.bf16.mxu0 0
        %549 = vmatpush1.bf16.msra.mxu0 0
        %550 = vmatprep.subr.bf16.mxu0 0
        %551 = vmatpush1.bf16.msra.mxu0 0
        %552 = vmatprep.subr.bf16.mxu0 0
        %553 = vmatpush1.bf16.msra.mxu0 0
        %554 = vmatprep.subr.bf16.mxu0 0
        %555 = vmatpush1.bf16.msra.mxu0 0
        %556 = vmatprep.subr.bf16.mxu0 0
        %557 = vmatpush1.bf16.msra.mxu0 0
        %558 = vmatprep.subr.bf16.mxu0 0
        %559 = vmatpush1.bf16.msra.mxu0 0
        %560 = vmatprep.subr.bf16.mxu0 0
        %561 = vmatpush1.bf16.msra.mxu0 0
        %562 = vmatprep.subr.bf16.mxu0 0
        %563 = vmatpush1.bf16.msra.mxu0 0
        %564 = vmatprep.mubr.bf16.mxu0 0
        %565 = vmatmul.mubr.bf16.gmra.mrb[0].mxu0 %v527
        %v566 = vpop.f32.mrb[0].mxu0
        %v567 = vadd.f32 0.0, %v566
        %v568 = vpop.f32.mrb[0].mxu0
        %v569 = vpop.f32.mrb[0].mxu0
        %v570 = vpop.f32.mrb[0].mxu0
        %571 = vdwg.mxu0
        %v572 = vpack.c.bf16 %v567, %v567
        %v574 = vsel %vm351, %v572, 0
        %v577 = vsel %vm416, %v345, 0
        %579 = vmatprep.subr.bf16.mxu0 0
        %580 = vmatpush1.bf16.msra.mxu0 %v577
        %581 = vmatprep.subr.bf16.mxu0 0
        %582 = vmatpush1.bf16.msra.mxu0 0
        %583 = vmatprep.subr.bf16.mxu0 0
        %584 = vmatpush1.bf16.msra.mxu0 0
        %585 = vmatprep.subr.bf16.mxu0 0
        %586 = vmatpush1.bf16.msra.mxu0 0
        %587 = vmatprep.subr.bf16.mxu0 0
        %588 = vmatpush1.bf16.msra.mxu0 0
        %589 = vmatprep.subr.bf16.mxu0 0
        %590 = vmatpush1.bf16.msra.mxu0 0
        %591 = vmatprep.subr.bf16.mxu0 0
        %592 = vmatpush1.bf16.msra.mxu0 0
        %593 = vmatprep.subr.bf16.mxu0 0
        %594 = vmatpush1.bf16.msra.mxu0 0
        %595 = vmatprep.subr.bf16.mxu0 0
        %596 = vmatpush1.bf16.msra.mxu0 0
        %597 = vmatprep.subr.bf16.mxu0 0
        %598 = vmatpush1.bf16.msra.mxu0 0
        %599 = vmatprep.subr.bf16.mxu0 0
        %600 = vmatpush1.bf16.msra.mxu0 0
        %601 = vmatprep.subr.bf16.mxu0 0
        %602 = vmatpush1.bf16.msra.mxu0 0
        %603 = vmatprep.subr.bf16.mxu0 0
        %604 = vmatpush1.bf16.msra.mxu0 0
        %605 = vmatprep.subr.bf16.mxu0 0
        %606 = vmatpush1.bf16.msra.mxu0 0
        %607 = vmatprep.subr.bf16.mxu0 0
        %608 = vmatpush1.bf16.msra.mxu0 0
        %609 = vmatprep.subr.bf16.mxu0 0
        %610 = vmatpush1.bf16.msra.mxu0 0
        %611 = vmatprep.mubr.bf16.mxu0 0
        %612 = vmatmul.mubr.bf16.gmra.mrb[0].mxu0 %v574
        %v613 = vpop.f32.mrb[0].mxu0
        %v614 = vadd.f32 0.0, %v613
        %v615 = vpop.f32.mrb[0].mxu0
        %v616 = vpop.f32.mrb[0].mxu0
        %v617 = vpop.f32.mrb[0].mxu0
        %618 = vdwg.mxu0
        %v620 = vsel %vm351, %v460, 0
        %v623 = vsel %vm416, %v344, 0
        %625 = vmatprep.subr.bf16.mxu0 0
        %626 = vmatpush1.bf16.msra.mxu0 %v623
        %627 = vmatprep.subr.bf16.mxu0 0
        %628 = vmatpush1.bf16.msra.mxu0 0
        %629 = vmatprep.subr.bf16.mxu0 0
        %630 = vmatpush1.bf16.msra.mxu0 0
        %631 = vmatprep.subr.bf16.mxu0 0
        %632 = vmatpush1.bf16.msra.mxu0 0
        %633 = vmatprep.subr.bf16.mxu0 0
        %634 = vmatpush1.bf16.msra.mxu0 0
        %635 = vmatprep.subr.bf16.mxu0 0
        %636 = vmatpush1.bf16.msra.mxu0 0
        %637 = vmatprep.subr.bf16.mxu0 0
        %638 = vmatpush1.bf16.msra.mxu0 0
        %639 = vmatprep.subr.bf16.mxu0 0
        %640 = vmatpush1.bf16.msra.mxu0 0
        %641 = vmatprep.subr.bf16.mxu0 0
        %642 = vmatpush1.bf16.msra.mxu0 0
        %643 = vmatprep.subr.bf16.mxu0 0
        %644 = vmatpush1.bf16.msra.mxu0 0
        %645 = vmatprep.subr.bf16.mxu0 0
        %646 = vmatpush1.bf16.msra.mxu0 0
        %647 = vmatprep.subr.bf16.mxu0 0
        %648 = vmatpush1.bf16.msra.mxu0 0
        %649 = vmatprep.subr.bf16.mxu0 0
        %650 = vmatpush1.bf16.msra.mxu0 0
        %651 = vmatprep.subr.bf16.mxu0 0
        %652 = vmatpush1.bf16.msra.mxu0 0
        %653 = vmatprep.subr.bf16.mxu0 0
        %654 = vmatpush1.bf16.msra.mxu0 0
        %655 = vmatprep.subr.bf16.mxu0 0
        %656 = vmatpush1.bf16.msra.mxu0 0
        %657 = vmatprep.mubr.bf16.mxu0 0
        %658 = vmatmul.mubr.bf16.gmra.mrb[0].mxu0 %v620
        %v659 = vpop.f32.mrb[0].mxu0
        %v660 = vadd.f32 %v614, %v659
        %v661 = vpop.f32.mrb[0].mxu0
        %v662 = vpop.f32.mrb[0].mxu0
        %v663 = vpop.f32.mrb[0].mxu0
        %664 = vdwg.mxu0
        %665 = vrot.lane.b32.xlu0 %v338, 112
        %v666 = vpop.permute.xlu0 %665
        %667 = vrot.lane.b32.xlu0 %v338, 80
        %v668 = vpop.permute.xlu0 %667
        %v670 = vsel %vm351, %v666, 0
        %v673 = vsel %vm351, %v668, 0
        %675 = vmatprep.subr.bf16.mxu0 0
        %676 = vmatpush1.bf16.xpose.msra.mxu0 %v673
        %677 = vmatprep.subr.bf16.mxu0 0
        %678 = vmatpush1.bf16.xpose.msra.mxu0 0
        %679 = vmatprep.subr.bf16.mxu0 0
        %680 = vmatpush1.bf16.xpose.msra.mxu0 0
        %681 = vmatprep.subr.bf16.mxu0 0
        %682 = vmatpush1.bf16.xpose.msra.mxu0 0
        %683 = vmatprep.subr.bf16.mxu0 0
        %684 = vmatpush1.bf16.xpose.msra.mxu0 0
        %685 = vmatprep.subr.bf16.mxu0 0
        %686 = vmatpush1.bf16.xpose.msra.mxu0 0
        %687 = vmatprep.subr.bf16.mxu0 0
        %688 = vmatpush1.bf16.xpose.msra.mxu0 0
        %689 = vmatprep.subr.bf16.mxu0 0
        %690 = vmatpush1.bf16.xpose.msra.mxu0 0
        %691 = vmatprep.subr.bf16.mxu0 0
        %692 = vmatpush1.bf16.xpose.msra.mxu0 0
        %693 = vmatprep.subr.bf16.mxu0 0
        %694 = vmatpush1.bf16.xpose.msra.mxu0 0
        %695 = vmatprep.subr.bf16.mxu0 0
        %696 = vmatpush1.bf16.xpose.msra.mxu0 0
        %697 = vmatprep.subr.bf16.mxu0 0
        %698 = vmatpush1.bf16.xpose.msra.mxu0 0
        %699 = vmatprep.subr.bf16.mxu0 0
        %700 = vmatpush1.bf16.xpose.msra.mxu0 0
        %701 = vmatprep.subr.bf16.mxu0 0
        %702 = vmatpush1.bf16.xpose.msra.mxu0 0
        %703 = vmatprep.subr.bf16.mxu0 0
        %704 = vmatpush1.bf16.xpose.msra.mxu0 0
        %705 = vmatprep.subr.bf16.mxu0 0
        %706 = vmatpush1.bf16.xpose.msra.mxu0 0
        %707 = vmatprep.mubr.bf16.mxu0 0
        %708 = vmatmul.mubr.bf16.gmra.mrb[0].mxu0 %v670
        %v709 = vpop.f32.mrb[0].mxu0
        %v710 = vadd.f32 0.0, %v709
        %v711 = vpop.f32.mrb[0].mxu0
        %v712 = vpop.f32.mrb[0].mxu0
        %v713 = vpop.f32.mrb[0].mxu0
        %714 = vdwg.mxu0
        %v715 = vsel %vm343, %v710, -10000.0
        %v716 = vsel %vm351, %v715, -inf
        %717 = vmax.xlane.f32.xlu0 %v716
        %v718 = vpop.xlane.xlu0 %717
        %v719 = vsub.f32 %v715, %v718
        %v720 = vmul.f32 %v719, 1.442695
        %v721 = vpow.pop %v720
        %v722 = vsel %vm351, %v721, 0.0
        %723 = vadd.xlane.f32.xlu0 %v722
        %v724 = vpop.xlane.xlu0 %723
        %v725 = vrcp.pop %v724
        %v726 = vmul.f32 %v721, %v725
        %v727 = vpack.c.bf16 %v726, %v726
        %728 = vrot.lane.b32.xlu0 %v338, 48
        %v729 = vpop.permute.xlu0 %728
        %v731 = vsel %vm351, %v727, 0
        %v734 = vsel %vm416, %v729, 0
        %736 = vmatprep.subr.bf16.mxu0 0
        %737 = vmatpush1.bf16.msra.mxu0 %v734
        %738 = vmatprep.subr.bf16.mxu0 0
        %739 = vmatpush1.bf16.msra.mxu0 0
        %740 = vmatprep.subr.bf16.mxu0 0
        %741 = vmatpush1.bf16.msra.mxu0 0
        %742 = vmatprep.subr.bf16.mxu0 0
        %743 = vmatpush1.bf16.msra.mxu0 0
        %744 = vmatprep.subr.bf16.mxu0 0
        %745 = vmatpush1.bf16.msra.mxu0 0
        %746 = vmatprep.subr.bf16.mxu0 0
        %747 = vmatpush1.bf16.msra.mxu0 0
        %748 = vmatprep.subr.bf16.mxu0 0
        %749 = vmatpush1.bf16.msra.mxu0 0
        %750 = vmatprep.subr.bf16.mxu0 0
        %751 = vmatpush1.bf16.msra.mxu0 0
        %752 = vmatprep.subr.bf16.mxu0 0
        %753 = vmatpush1.bf16.msra.mxu0 0
        %754 = vmatprep.subr.bf16.mxu0 0
        %755 = vmatpush1.bf16.msra.mxu0 0
        %756 = vmatprep.subr.bf16.mxu0 0
        %757 = vmatpush1.bf16.msra.mxu0 0
        %758 = vmatprep.subr.bf16.mxu0 0
        %759 = vmatpush1.bf16.msra.mxu0 0
        %760 = vmatprep.subr.bf16.mxu0 0
        %761 = vmatpush1.bf16.msra.mxu0 0
        %762 = vmatprep.subr.bf16.mxu0 0
        %763 = vmatpush1.bf16.msra.mxu0 0
        %764 = vmatprep.subr.bf16.mxu0 0
        %765 = vmatpush1.bf16.msra.mxu0 0
        %766 = vmatprep.subr.bf16.mxu0 0
        %767 = vmatpush1.bf16.msra.mxu0 0
        %768 = vmatprep.mubr.bf16.mxu0 0
        %769 = vmatmul.mubr.bf16.gmra.mrb[0].mxu0 %v731
        %v770 = vpop.f32.mrb[0].mxu0
        %v771 = vadd.f32 0.0, %v770
        %v772 = vpop.f32.mrb[0].mxu0
        %v773 = vpop.f32.mrb[0].mxu0
        %v774 = vpop.f32.mrb[0].mxu0
        %775 = vdwg.mxu0
        %v776 = vpack.c.bf16 %v771, %v771
        %v778 = vsel %vm351, %v776, 0
        %v781 = vsel %vm416, %v346, 0
        %783 = vmatprep.subr.bf16.mxu0 0
        %784 = vmatpush1.bf16.msra.mxu0 %v781
        %785 = vmatprep.subr.bf16.mxu0 0
        %786 = vmatpush1.bf16.msra.mxu0 0
        %787 = vmatprep.subr.bf16.mxu0 0
        %788 = vmatpush1.bf16.msra.mxu0 0
        %789 = vmatprep.subr.bf16.mxu0 0
        %790 = vmatpush1.bf16.msra.mxu0 0
        %791 = vmatprep.subr.bf16.mxu0 0
        %792 = vmatpush1.bf16.msra.mxu0 0
        %793 = vmatprep.subr.bf16.mxu0 0
        %794 = vmatpush1.bf16.msra.mxu0 0
        %795 = vmatprep.subr.bf16.mxu0 0
        %796 = vmatpush1.bf16.msra.mxu0 0
        %797 = vmatprep.subr.bf16.mxu0 0
        %798 = vmatpush1.bf16.msra.mxu0 0
        %799 = vmatprep.subr.bf16.mxu0 0
        %800 = vmatpush1.bf16.msra.mxu0 0
        %801 = vmatprep.subr.bf16.mxu0 0
        %802 = vmatpush1.bf16.msra.mxu0 0
        %803 = vmatprep.subr.bf16.mxu0 0
        %804 = vmatpush1.bf16.msra.mxu0 0
        %805 = vmatprep.subr.bf16.mxu0 0
        %806 = vmatpush1.bf16.msra.mxu0 0
        %807 = vmatprep.subr.bf16.mxu0 0
        %808 = vmatpush1.bf16.msra.mxu0 0
        %809 = vmatprep.subr.bf16.mxu0 0
        %810 = vmatpush1.bf16.msra.mxu0 0
        %811 = vmatprep.subr.bf16.mxu0 0
        %812 = vmatpush1.bf16.msra.mxu0 0
        %813 = vmatprep.subr.bf16.mxu0 0
        %814 = vmatpush1.bf16.msra.mxu0 0
        %815 = vmatprep.mubr.bf16.mxu0 0
        %816 = vmatmul.mubr.bf16.gmra.mrb[0].mxu0 %v778
        %v817 = vpop.f32.mrb[0].mxu0
        %v818 = vadd.f32 0.0, %v817
        %v819 = vpop.f32.mrb[0].mxu0
        %v820 = vpop.f32.mrb[0].mxu0
        %v821 = vpop.f32.mrb[0].mxu0
        %822 = vdwg.mxu0
        %v823 = vadd.f32 %v660, %v818
        %824 = vrot.lane.b32.xlu0 %v338, 104
        %v825 = vpop.permute.xlu0 %824
        %826 = vrot.lane.b32.xlu0 %v338, 72
        %v827 = vpop.permute.xlu0 %826
        %v829 = vsel %vm351, %v825, 0
        %v832 = vsel %vm351, %v827, 0
        %834 = vmatprep.subr.bf16.mxu0 0
        %835 = vmatpush1.bf16.xpose.msra.mxu0 %v832
        %836 = vmatprep.subr.bf16.mxu0 0
        %837 = vmatpush1.bf16.xpose.msra.mxu0 0
        %838 = vmatprep.subr.bf16.mxu0 0
        %839 = vmatpush1.bf16.xpose.msra.mxu0 0
        %840 = vmatprep.subr.bf16.mxu0 0
        %841 = vmatpush1.bf16.xpose.msra.mxu0 0
        %842 = vmatprep.subr.bf16.mxu0 0
        %843 = vmatpush1.bf16.xpose.msra.mxu0 0
        %844 = vmatprep.subr.bf16.mxu0 0
        %845 = vmatpush1.bf16.xpose.msra.mxu0 0
        %846 = vmatprep.subr.bf16.mxu0 0
        %847 = vmatpush1.bf16.xpose.msra.mxu0 0
        %848 = vmatprep.subr.bf16.mxu0 0
        %849 = vmatpush1.bf16.xpose.msra.mxu0 0
        %850 = vmatprep.subr.bf16.mxu0 0
        %851 = vmatpush1.bf16.xpose.msra.mxu0 0
        %852 = vmatprep.subr.bf16.mxu0 0
        %853 = vmatpush1.bf16.xpose.msra.mxu0 0
        %854 = vmatprep.subr.bf16.mxu0 0
        %855 = vmatpush1.bf16.xpose.msra.mxu0 0
        %856 = vmatprep.subr.bf16.mxu0 0
        %857 = vmatpush1.bf16.xpose.msra.mxu0 0
        %858 = vmatprep.subr.bf16.mxu0 0
        %859 = vmatpush1.bf16.xpose.msra.mxu0 0
        %860 = vmatprep.subr.bf16.mxu0 0
        %861 = vmatpush1.bf16.xpose.msra.mxu0 0
        %862 = vmatprep.subr.bf16.mxu0 0
        %863 = vmatpush1.bf16.xpose.msra.mxu0 0
        %864 = vmatprep.subr.bf16.mxu0 0
        %865 = vmatpush1.bf16.xpose.msra.mxu0 0
        %866 = vmatprep.mubr.bf16.mxu0 0
        %867 = vmatmul.mubr.bf16.gmra.mrb[0].mxu0 %v829
        %v868 = vpop.f32.mrb[0].mxu0
        %v869 = vadd.f32 0.0, %v868
        %v870 = vpop.f32.mrb[0].mxu0
        %v871 = vpop.f32.mrb[0].mxu0
        %v872 = vpop.f32.mrb[0].mxu0
        %873 = vdwg.mxu0
        %v874 = vsel %vm343, %v869, -10000.0
        %v875 = vsel %vm351, %v874, -inf
        %876 = vmax.xlane.f32.xlu0 %v875
        %v877 = vpop.xlane.xlu0 %876
        %v878 = vsub.f32 %v874, %v877
        %v879 = vmul.f32 %v878, 1.442695
        %v880 = vpow.pop %v879
        %v881 = vsel %vm351, %v880, 0.0
        %882 = vadd.xlane.f32.xlu0 %v881
        %v883 = vpop.xlane.xlu0 %882
        %v884 = vrcp.pop %v883
        %v885 = vmul.f32 %v880, %v884
        %v886 = vpack.c.bf16 %v885, %v885
        %887 = vrot.lane.b32.xlu0 %v338, 40
        %v888 = vpop.permute.xlu0 %887
        %v890 = vsel %vm351, %v886, 0
        %v893 = vsel %vm416, %v888, 0
        %895 = vmatprep.subr.bf16.mxu0 0
        %896 = vmatpush1.bf16.msra.mxu0 %v893
        %897 = vmatprep.subr.bf16.mxu0 0
        %898 = vmatpush1.bf16.msra.mxu0 0
        %899 = vmatprep.subr.bf16.mxu0 0
        %900 = vmatpush1.bf16.msra.mxu0 0
        %901 = vmatprep.subr.bf16.mxu0 0
        %902 = vmatpush1.bf16.msra.mxu0 0
        %903 = vmatprep.subr.bf16.mxu0 0
        %904 = vmatpush1.bf16.msra.mxu0 0
        %905 = vmatprep.subr.bf16.mxu0 0
        %906 = vmatpush1.bf16.msra.mxu0 0
        %907 = vmatprep.subr.bf16.mxu0 0
        %908 = vmatpush1.bf16.msra.mxu0 0
        %909 = vmatprep.subr.bf16.mxu0 0
        %910 = vmatpush1.bf16.msra.mxu0 0
        %911 = vmatprep.subr.bf16.mxu0 0
        %912 = vmatpush1.bf16.msra.mxu0 0
        %913 = vmatprep.subr.bf16.mxu0 0
        %914 = vmatpush1.bf16.msra.mxu0 0
        %915 = vmatprep.subr.bf16.mxu0 0
        %916 = vmatpush1.bf16.msra.mxu0 0
        %917 = vmatprep.subr.bf16.mxu0 0
        %918 = vmatpush1.bf16.msra.mxu0 0
        %919 = vmatprep.subr.bf16.mxu0 0
        %920 = vmatpush1.bf16.msra.mxu0 0
        %921 = vmatprep.subr.bf16.mxu0 0
        %922 = vmatpush1.bf16.msra.mxu0 0
        %923 = vmatprep.subr.bf16.mxu0 0
        %924 = vmatpush1.bf16.msra.mxu0 0
        %925 = vmatprep.subr.bf16.mxu0 0
        %926 = vmatpush1.bf16.msra.mxu0 0
        %927 = vmatprep.mubr.bf16.mxu0 0
        %928 = vmatmul.mubr.bf16.gmra.mrb[0].mxu0 %v890
        %v929 = vpop.f32.mrb[0].mxu0
        %v930 = vadd.f32 0.0, %v929
        %v931 = vpop.f32.mrb[0].mxu0
        %v932 = vpop.f32.mrb[0].mxu0
        %v933 = vpop.f32.mrb[0].mxu0
        %934 = vdwg.mxu0
        %v935 = vpack.c.bf16 %v930, %v930
        %v937 = vsel %vm351, %v935, 0
        %v940 = vsel %vm416, %v347, 0
        %942 = vmatprep.subr.bf16.mxu0 0
        %943 = vmatpush1.bf16.msra.mxu0 %v940
        %944 = vmatprep.subr.bf16.mxu0 0
        %945 = vmatpush1.bf16.msra.mxu0 0
        %946 = vmatprep.subr.bf16.mxu0 0
        %947 = vmatpush1.bf16.msra.mxu0 0
        %948 = vmatprep.subr.bf16.mxu0 0
        %949 = vmatpush1.bf16.msra.mxu0 0
        %950 = vmatprep.subr.bf16.mxu0 0
        %951 = vmatpush1.bf16.msra.mxu0 0
        %952 = vmatprep.subr.bf16.mxu0 0
        %953 = vmatpush1.bf16.msra.mxu0 0
        %954 = vmatprep.subr.bf16.mxu0 0
        %955 = vmatpush1.bf16.msra.mxu0 0
        %956 = vmatprep.subr.bf16.mxu0 0
        %957 = vmatpush1.bf16.msra.mxu0 0
        %958 = vmatprep.subr.bf16.mxu0 0
        %959 = vmatpush1.bf16.msra.mxu0 0
        %960 = vmatprep.subr.bf16.mxu0 0
        %961 = vmatpush1.bf16.msra.mxu0 0
        %962 = vmatprep.subr.bf16.mxu0 0
        %963 = vmatpush1.bf16.msra.mxu0 0
        %964 = vmatprep.subr.bf16.mxu0 0
        %965 = vmatpush1.bf16.msra.mxu0 0
        %966 = vmatprep.subr.bf16.mxu0 0
        %967 = vmatpush1.bf16.msra.mxu0 0
        %968 = vmatprep.subr.bf16.mxu0 0
        %969 = vmatpush1.bf16.msra.mxu0 0
        %970 = vmatprep.subr.bf16.mxu0 0
        %971 = vmatpush1.bf16.msra.mxu0 0
        %972 = vmatprep.subr.bf16.mxu0 0
        %973 = vmatpush1.bf16.msra.mxu0 0
        %974 = vmatprep.mubr.bf16.mxu0 0
        %975 = vmatmul.mubr.bf16.gmra.mrb[0].mxu0 %v937
        %v976 = vpop.f32.mrb[0].mxu0
        %v977 = vadd.f32 0.0, %v976
        %v978 = vpop.f32.mrb[0].mxu0
        %v979 = vpop.f32.mrb[0].mxu0
        %v980 = vpop.f32.mrb[0].mxu0
        %981 = vdwg.mxu0
        %v982 = vadd.f32 %v823, %v977
        %v983 = vld [vmem:[%s4] sm:$0x1]
        %v985 = vlaneseq
        %v986 = vshrl.u32 %v985, 7
        %v987 = vsub.s32 0, %v986
        %v988 = vrot.slane %v983, %v987
        %v990 = vadd.f32 %v982, %v988
        %991 = vst.msk [vmem:[%s268] sm:$0xff] %vm294, %v990
        %s992 = sand.u32 %s141, 1
        %s993 = scalar_lea.sflag [#allocation4], %s992
        %s994 = sand.u32 %s141, 1
        %s995 = smul.addr %s994, 8
        %s996 = scalar_lea.vmem [#allocation8], %s995
        // Predicated region
        $region53: #{tpu_custom_call.1} parent=39 // pred_check
          %p997 = pneg %p151
        $region54: #{tpu_custom_call.1} parent=39 // pred_check_branch
          %999 = sbr.rel (%p997) target = $region56
        $region55: #{tpu_custom_call.1} parent=39 // pred_region
          %s1001 = ssub.s32 128, 128
          %1002 = vsyncadd %s993, %s1001
          %s1003 = smul.addr %s23, 128
          %s1004 = scalar_lea.hbm %s5, %s1003
          %s1006 = sshll.u32 %s996, 4
          %s1007 = int_to_ptr.vmem [resolvable:$true] %s1006
          %1009 = dma.vmem_to_hbm [thread:$0]  %s1007, 128, %s1004, %s993
        $region56: #{tpu_custom_call.1} parent=39 // pred_fallthru
          _
      $region40: #{tpu_custom_call.1} parent=5 // pred_fallthru
        _
      %p1010 = scmp.le.s32.totalorder 2, %s18
      // Predicated region
      $region57: #{tpu_custom_call.1} parent=5 // pred_check
        %p1011 = pneg %p1010
      $region58: #{tpu_custom_call.1} parent=5 // pred_check_branch
        %1013 = sbr.rel (%p1011) target = $region60
      $region59: #{tpu_custom_call.1} parent=5 // pred_region
        %s1014 = ssub.s32 %s18, 2
        // Predicated region
        $region61: #{tpu_custom_call.1} parent=59 // pred_check
          %p1015 = pneg %p157
        $region62: #{tpu_custom_call.1} parent=59 // pred_check_branch
          %1017 = sbr.rel (%p1015) target = $region64
        $region63: #{tpu_custom_call.1} parent=59 // pred_region
          %s1018 = sand.u32 %s142, 1
          %s1019 = scalar_lea.sflag [#allocation4], %s1018
          %s1020 = sand.u32 %s142, 1
          %s1021 = smul.addr %s1020, 8
          %s1022 = scalar_lea.vmem [#allocation8], %s1021
          %1023 = dma.done %s1019, 128
        $region64: #{tpu_custom_call.1} parent=59 // pred_fallthru
          _
      $region60: #{tpu_custom_call.1} parent=5 // pred_fallthru
        _
    $region6: #{tpu_custom_call.1} parent=1 // loop_footer
      %s22 = sadd.s32 1, %s18
    $region7: #{tpu_custom_call.1} parent=1 // loop_footer_branch
      %17 = sbr.rel target = $region3
    $region8: #{tpu_custom_call.1} parent=1 // loop_exit
      _
    %1024 = vsyncpa [#allocation3], 1
    %s1025 = scalar_lea.sflag [#allocation3], 1
    %1026 = vsyncpa %s1025, 1
    %1027 = vsyncpa [#allocation6], 1
    %1028 = vsyncpa [#allocation4], 1
    %s1029 = scalar_lea.sflag [#allocation4], 1
    %1030 = vsyncpa %s1029, 1

</llo_original>
